<compile_context>
chip_gen: v7x
topology: tpu7x:2x2x1
jax: 0.10.0
libtpu: 0.0.40
codegen_flags: <defaults>
</compile_context>

<pallas_src>
import functools
import math

import jax
import jax.numpy as jnp
import numpy as np
from jax.experimental import pallas as pl
from jax.experimental.pallas import tpu as pltpu

_COMPUTE_DTYPE = jnp.bfloat16


# ----------------------------------------------------------------------------
# Hardware-aware sizing helpers.
# ----------------------------------------------------------------------------
@functools.lru_cache(maxsize=None)
def _vmem_budget_bytes():
    cap = 64 << 20                      # conservative default (v7x per-TC VMEM)
    try:
        cap = int(getattr(pltpu.get_tpu_info(), "vmem_capacity_bytes", cap))
    except Exception:
        pass
    return max(32 << 20, min(cap * 3 // 4, 100 << 20))


def _block_byte_cap():
    return (8 << 20) if _vmem_budget_bytes() >= (80 << 20) else (5 << 20)


def _pick_tile(dim, max_elems, align):
    """Largest divisor of `dim` that is <= max_elems and a multiple of `align`
    (or equal to `dim` itself, which is always legal as a full-extent block)."""
    cap = int(min(dim, max(1, max_elems)))
    for t in range(cap, 0, -1):
        if dim % t == 0 and (t % align == 0 or t == dim):
            return t
    return dim


def _round_up(v, m):
    return -(-v // m) * m


def _pad_k(k):
    """Pad a contraction dim to a multiple of 128 when cheap (<=12.5%), else to 16."""
    k128 = _round_up(k, 128)
    return k128 if (k128 - k) * 8 <= k else _round_up(k, 16)


# ----------------------------------------------------------------------------
# Shared epilogue.
# ----------------------------------------------------------------------------
def _apply_act(y, act):
    if act == "relu":
        return jnp.maximum(y, 0.0)
    if act == "gelu":
        # TODO(synk): PyTorch F.gelu defaults to the exact erf form; tanh approximation
        # used here for Mosaic-safe lowering (max abs diff ~1e-3).
        c = math.sqrt(2.0 / math.pi)
        return 0.5 * y * (1.0 + jnp.tanh(c * (y + 0.044715 * y * y * y)))
    if act == "sigmoid":
        return jax.nn.sigmoid(y)
    return y


# ----------------------------------------------------------------------------
# Pallas kernel 1:  o = act( x @ w + b )   (f32 accumulation & epilogue)
# Used for the layers whose im2col / flattening is cheap (enc1..enc5, heads, dec1).
# ----------------------------------------------------------------------------
def _matmul_bias_act_kernel(x_ref, w_ref, b_ref, o_ref, *, act):
    y = jnp.dot(x_ref[...], w_ref[...], preferred_element_type=jnp.float32)
    y = y + b_ref[...].astype(jnp.float32)
    o_ref[...] = _apply_act(y, act).astype(o_ref.dtype)


def matmul_bias_act(x, w, b, act, out_dtype, max_tm=8192):
    """act( x[M,K] @ w[K,N] + b[N] ) with bf16 inputs and f32 accumulation."""
    M, K = x.shape
    Kw, N = w.shape
    assert K == Kw and b.shape == (N,), (x.shape, w.shape, b.shape)

    Kp = _pad_k(K)
    if Kp != K:
        x = jnp.pad(x, ((0, 0), (0, Kp - K)))
        w = jnp.pad(w, ((0, Kp - K), (0, 0)))
        K = Kp

    xb = x.astype(_COMPUTE_DTYPE)
    wb = w.astype(_COMPUTE_DTYPE)
    bb = b.reshape(1, N).astype(jnp.float32)

    esz = 2  # bf16
    blk_cap = _block_byte_cap()
    tm = _pick_tile(M, min(max_tm, blk_cap // (K * esz)), 16)
    tn = _pick_tile(N, blk_cap // (K * esz), 128)
    grid = (M // tm, N // tn)

    out_esz = jnp.dtype(out_dtype).itemsize
    vmem = (2 * (tm * K * esz + K * tn * esz + tm * tn * out_esz)
            + tm * tn * 4 + 2 * tn * 4 + (4 << 20))
    vmem = int(min(max(vmem, 32 << 20), _vmem_budget_bytes()))

    kernel = functools.partial(_matmul_bias_act_kernel, act=act)
    return pl.pallas_call(
        kernel,
        out_shape=jax.ShapeDtypeStruct((M, N), out_dtype),
        grid_spec=pltpu.PrefetchScalarGridSpec(
            num_scalar_prefetch=0,
            grid=grid,
            in_specs=[
                pl.BlockSpec((tm, K), lambda i, j: (i, 0)),
                pl.BlockSpec((K, tn), lambda i, j: (0, j)),
                pl.BlockSpec((1, tn), lambda i, j: (0, j)),
            ],
            out_specs=pl.BlockSpec((tm, tn), lambda i, j: (i, j)),
        ),
        compiler_params=pltpu.CompilerParams(
            dimension_semantics=("parallel", "parallel"),
            vmem_limit_bytes=vmem,
        ),
    )(xb, wb, bb)


# ----------------------------------------------------------------------------
# Pallas kernel 2:  ConvTranspose3d(kernel=4, stride=2, padding=1), all 8 output
# parities fused along N, 27 taps generated IN-KERNEL from three halo'd depth planes.
#
#   out[2i+r0, 2j+r1, 2k+r2] = sum_{a in {0,1}^3} xp[i+r0+a0, j+r1+a1, k+r2+a2]
#                              . W[:, :, 3-r0-2a0, 3-r1-2a1, 3-r2-2a2]
# The 27 distinct shifts s = r + a form the contraction; parities stack along N
# (zero weight blocks where a tap does not feed a parity).
# ----------------------------------------------------------------------------
def _deconv_s2_kernel(p0_ref, p1_ref, p2_ref, w_ref, b_ref, o_ref, xcol_ref,
                      *, hh, ww, cin, act):
    planes = (p0_ref, p1_ref, p2_ref)
    t = 0
    for s0 in range(3):
        pr = planes[s0]
        for s1 in range(3):
            for s2 in range(3):
                xcol_ref[:, :, t * cin:(t + 1) * cin] = (
                    pr[0, 0, s1:s1 + hh, s2:s2 + ww, :])
                t += 1
    xcol = xcol_ref[...].reshape(hh * ww, 27 * cin)
    y = jnp.dot(xcol, w_ref[...], preferred_element_type=jnp.float32)
    y = y + b_ref[...].astype(jnp.float32)
    y = _apply_act(y, act).astype(o_ref.dtype)
    o_ref[0, 0] = y.reshape(hh, ww, o_ref.shape[-1])


def conv_transpose3d_k4s2p1(x, w, b, act, out_dtype=_COMPUTE_DTYPE):
    """ConvTranspose3d(kernel=4, stride=2, padding=1). x: NDHWC, w: (Cin,Cout,4,4,4)."""
    n, d, h, wd, cin = x.shape
    cout = w.shape[1]
    K = 27 * cin
    nfused = 8 * cout

    xp = jnp.pad(x.astype(_COMPUTE_DTYPE),
                 ((0, 0), (1, 1), (1, 1), (1, 1), (0, 0)))

    # Fused weight: K ordered (s0, s1, s2, cin); N ordered (r0, r1, r2, cout).
    wb = w.astype(_COMPUTE_DTYPE)
    zero = jnp.zeros((cin, cout), _COMPUTE_DTYPE)
    rows = []
    for s0 in range(3):
        for s1 in range(3):
            for s2 in range(3):
                par = []
                for r0 in range(2):
                    for r1 in range(2):
                        for r2 in range(2):
                            a0, a1, a2 = s0 - r0, s1 - r1, s2 - r2
                            if 0 <= a0 <= 1 and 0 <= a1 <= 1 and 0 <= a2 <= 1:
                                par.append(wb[:, :, 3 - r0 - 2 * a0,
                                              3 - r1 - 2 * a1,
                                              3 - r2 - 2 * a2])
                            else:
                                par.append(zero)
                rows.append(jnp.concatenate(par, axis=1))     # (Cin, 8*Cout)
    wcol = jnp.concatenate(rows, axis=0)                      # (27*Cin, 8*Cout)
    b8 = jnp.tile(b.astype(jnp.float32), 8).reshape(1, nfused)

    tn = _pick_tile(nfused, _block_byte_cap() // (K * 2), 128)
    nb = nfused // tn
    # Grid: depth innermost so the (K, tn) weight block is DMA'd once per N-block.
    grid = (n, nb, d)

    def plane_spec(s):
        return pl.BlockSpec((1, 1, h + 2, wd + 2, cin),
                            lambda bi, nbi, di, _s=s: (bi, di + _s, 0, 0, 0))

    in_specs = [plane_spec(0), plane_spec(1), plane_spec(2),
                pl.BlockSpec((K, tn), lambda bi, nbi, di: (0, nbi)),
                pl.BlockSpec((1, tn), lambda bi, nbi, di: (0, nbi))]
    out_spec = pl.BlockSpec((1, 1, h, wd, tn),
                            lambda bi, nbi, di: (bi, di, 0, 0, nbi))

    out_esz = jnp.dtype(out_dtype).itemsize
    plane_b = (h + 2) * (wd + 2) * cin * 2
    vmem = (2 * (3 * plane_b + K * tn * 2 + tn * 4 + h * wd * tn * out_esz)
            + h * wd * K * 2 + (4 << 20))
    vmem = int(min(max(vmem, 32 << 20), _vmem_budget_bytes()))

    kernel = functools.partial(_deconv_s2_kernel, hh=h, ww=wd, cin=cin, act=act)
    y = pl.pallas_call(
        kernel,
        out_shape=jax.ShapeDtypeStruct((n, d, h, wd, nfused), out_dtype),
        grid_spec=pltpu.PrefetchScalarGridSpec(
            num_scalar_prefetch=0,
            grid=grid,
            in_specs=in_specs,
            out_specs=out_spec,
            scratch_shapes=[pltpu.VMEM((h, wd, K), _COMPUTE_DTYPE)],
        ),
        compiler_params=pltpu.CompilerParams(
            dimension_semantics=("parallel", "parallel", "parallel"),
            vmem_limit_bytes=vmem,
        ),
    )(xp, xp, xp, wcol, b8)

    # Interleave the 8 output parities back into the upsampled volume.
    y = y.reshape(n, d, h, wd, 2, 2, 2, cout)
    y = jnp.transpose(y, (0, 1, 4, 2, 5, 3, 6, 7))
    return y.reshape(n, 2 * d, 2 * h, 2 * wd, cout)


# ----------------------------------------------------------------------------
# Conv lowerings built on the shared matmul kernel (cheap layers).
# ----------------------------------------------------------------------------
def conv3d_k3s2p1(x, w, b, act, out_dtype=_COMPUTE_DTYPE):
    """Conv3d(kernel=3, stride=2, padding=1). x: NDHWC, w: (Cout,Cin,3,3,3).
    TODO(synk): still materializes a bf16 im2col in HBM (only ~90 MB total over the
    encoder); an in-kernel tap-generation variant would remove it."""
    n, d, h, wd, cin = x.shape
    cout = w.shape[0]
    do, ho, wo = (d + 1) // 2, (h + 1) // 2, (wd + 1) // 2
    xp = jnp.pad(x.astype(_COMPUTE_DTYPE),
                 ((0, 0), (1, 1), (1, 1), (1, 1), (0, 0)))
    cols = []
    for kd in range(3):
        for kh in range(3):
            for kw in range(3):
                cols.append(xp[:, kd:kd + 2 * do - 1:2,
                                  kh:kh + 2 * ho - 1:2,
                                  kw:kw + 2 * wo - 1:2, :])
    k0 = 27 * cin
    kp = _pad_k(k0)
    if kp > k0:   # fold the K pad into the concat so no second HBM copy is made
        cols.append(jnp.zeros((n, do, ho, wo, kp - k0), _COMPUTE_DTYPE))
    xcol = jnp.concatenate(cols, axis=-1).reshape(n * do * ho * wo, kp)
    wcol = jnp.transpose(w, (2, 3, 4, 1, 0)).reshape(k0, cout)
    if kp > k0:
        wcol = jnp.pad(wcol, ((0, kp - k0), (0, 0)))
    y = matmul_bias_act(xcol, wcol, b, act, out_dtype)
    return y.reshape(n, do, ho, wo, cout)


def conv3d_k4s1p0_heads(x, heads, out_dtype=jnp.float32):
    """Conv3d(kernel=4, stride=1, padding=0) on a 4^3 input; several output heads
    (e.g. mu & log_var) fused into one lane-dense matmul."""
    n, d, h, wd, cin = x.shape
    xf = x.reshape(n, d * h * wd * cin)
    wcols, biases, couts = [], [], []
    for (w, b) in heads:
        couts.append(w.shape[0])
        wcols.append(jnp.transpose(w, (2, 3, 4, 1, 0)).reshape(d * h * wd * cin,
                                                               w.shape[0]))
        biases.append(b)
    y = matmul_bias_act(xf, jnp.concatenate(wcols, axis=1),
                        jnp.concatenate(biases, axis=0), "none", out_dtype)
    outs, off = [], 0
    for co in couts:
        outs.append(y[:, off:off + co].reshape(n, 1, 1, 1, co))
        off += co
    return outs


def conv_transpose3d_k4s1p0_from_1(z, w, b, act, out_dtype=_COMPUTE_DTYPE):
    """ConvTranspose3d(kernel=4, stride=1, padding=0) on 1^3 input -> 4^3 output."""
    n = z.shape[0]
    cin, cout = w.shape[0], w.shape[1]
    zf = z.reshape(n, cin)
    wm = jnp.transpose(w, (0, 2, 3, 4, 1)).reshape(cin, 4 * 4 * 4 * cout)
    bb = jnp.broadcast_to(b.reshape(1, 1, 1, 1, cout),
                          (1, 4, 4, 4, cout)).reshape(4 * 4 * 4 * cout)
    y = matmul_bias_act(zf, wm, bb, act, out_dtype)
    return y.reshape(n, 4, 4, 4, cout)


# ----------------------------------------------------------------------------
# Parameters (deterministic synthetic init; shapes match the PyTorch module).
# ----------------------------------------------------------------------------
def _conv_w(key, shape):        # Conv3d: (Cout, Cin, k, k, k)
    fan_in = shape[1] * shape[2] * shape[3] * shape[4]
    return jax.random.normal(key, shape, jnp.float32) / np.sqrt(fan_in)


def _convT_w(key, shape):       # ConvTranspose3d: (Cin, Cout, k, k, k)
    fan_in = shape[0] * shape[2] * shape[3] * shape[4]
    return jax.random.normal(key, shape, jnp.float32) / np.sqrt(fan_in)


def init_params(key, in_channels=1, latent_dim=64, out_channels=1):
    keys = jax.random.split(key, 13)
    p = {}
    enc = [(in_channels, 32), (32, 64), (64, 128), (128, 256), (256, 512)]
    for i, (ci, co) in enumerate(enc):
        p[f"enc{i+1}_w"] = _conv_w(keys[i], (co, ci, 3, 3, 3))
        p[f"enc{i+1}_b"] = jnp.zeros((co,), jnp.float32)
    p["mu_w"] = _conv_w(keys[5], (latent_dim, 512, 4, 4, 4))
    p["mu_b"] = jnp.zeros((latent_dim,), jnp.float32)
    p["lv_w"] = _conv_w(keys[6], (latent_dim, 512, 4, 4, 4))
    p["lv_b"] = jnp.zeros((latent_dim,), jnp.float32)
    dec = [(latent_dim, 512), (512, 256), (256, 128), (128, 64), (64, 32),
           (32, out_channels)]
    for i, (ci, co) in enumerate(dec):
        p[f"dec{i+1}_w"] = _convT_w(keys[7 + i], (ci, co, 4, 4, 4))
        p[f"dec{i+1}_b"] = jnp.zeros((co,), jnp.float32)
    return p


# ----------------------------------------------------------------------------
# VAEGenerator.forward
# ----------------------------------------------------------------------------
def _vae_generator_forward(params, x_ncdhw, eps_key):
    x = jnp.transpose(x_ncdhw, (0, 2, 3, 4, 1)).astype(_COMPUTE_DTYPE)   # NCDHW -> NDHWC

    # ---- VAEEncoder ----
    for i in range(1, 6):
        x = conv3d_k3s2p1(x, params[f"enc{i}_w"], params[f"enc{i}_b"], "relu")
    mu, log_var = conv3d_k4s1p0_heads(
        x, [(params["mu_w"], params["mu_b"]), (params["lv_w"], params["lv_b"])],
        out_dtype=jnp.float32)                                           # (N,1,1,1,latent)

    # ---- reparameterize (tiny elementwise -> plain JAX glue) ----
    # TODO(synk): torch.randn_like uses torch's RNG stream; eps here comes from a JAX
    # PRNG key (same distribution, not bit-identical).
    std = jnp.exp(0.5 * log_var)
    eps = jax.random.normal(eps_key, std.shape, std.dtype)
    z = mu + eps * std

    # ---- VAEDecoder ----
    h = conv_transpose3d_k4s1p0_from_1(z, params["dec1_w"], params["dec1_b"], "gelu")
    h = conv_transpose3d_k4s2p1(h, params["dec2_w"], params["dec2_b"], "gelu")
    h = conv_transpose3d_k4s2p1(h, params["dec3_w"], params["dec3_b"], "gelu")
    h = conv_transpose3d_k4s2p1(h, params["dec4_w"], params["dec4_b"], "gelu")
    h = conv_transpose3d_k4s2p1(h, params["dec5_w"], params["dec5_b"], "gelu")
    recon = conv_transpose3d_k4s2p1(h, params["dec6_w"], params["dec6_b"], "sigmoid",
                                    out_dtype=jnp.float32)

    # back to PyTorch NCDHW
    recon = jnp.transpose(recon, (0, 4, 1, 2, 3))
    mu = jnp.transpose(mu, (0, 4, 1, 2, 3))
    log_var = jnp.transpose(log_var, (0, 4, 1, 2, 3))
    return recon, mu, log_var


vae_generator_forward = jax.jit(_vae_generator_forward)


# ----------------------------------------------------------------------------
# Numerical self-checks of every conv lowering against pure-JAX references.
# ----------------------------------------------------------------------------
def _self_check():
    key = jax.random.PRNGKey(42)
    ks = jax.random.split(key, 10)

    # (1) stride-2 3x3x3 conv (im2col path, with bias)
    x = jax.random.normal(ks[0], (1, 8, 8, 8, 8), jnp.float32)
    w = jax.random.normal(ks[1], (16, 8, 3, 3, 3), jnp.float32) * 0.1
    b = jax.random.normal(ks[2], (16,), jnp.float32) * 0.1
    got = jax.jit(lambda x, w, b: conv3d_k3s2p1(x, w, b, "none",
                                                out_dtype=jnp.float32))(x, w, b)
    ref = jax.lax.conv_general_dilated(
        x, jnp.transpose(w, (2, 3, 4, 1, 0)), window_strides=(2, 2, 2),
        padding=[(1, 1)] * 3, dimension_numbers=("NDHWC", "DHWIO", "NDHWC")) + b
    np.testing.assert_allclose(np.asarray(got), np.asarray(ref), rtol=5e-2, atol=5e-2)

    # (2) stride-2 4x4x4 transposed conv (in-kernel-taps kernel, with bias)
    xt = jax.random.normal(ks[3], (1, 4, 4, 4, 8), jnp.float32)
    wt = jax.random.normal(ks[4], (8, 16, 4, 4, 4), jnp.float32) * 0.1
    bt = jax.random.normal(ks[5], (16,), jnp.float32) * 0.1
    got_t = jax.jit(lambda x, w, b: conv_transpose3d_k4s2p1(x, w, b, "none",
                                                            out_dtype=jnp.float32))(xt, wt, bt)
    w_ref = jnp.transpose(jnp.flip(wt, axis=(2, 3, 4)), (2, 3, 4, 0, 1))   # DHWIO
    ref_t = jax.lax.conv_general_dilated(
        xt, w_ref, window_strides=(1, 1, 1), padding=[(2, 2)] * 3,
        lhs_dilation=(2, 2, 2), dimension_numbers=("NDHWC", "DHWIO", "NDHWC")) + bt
    np.testing.assert_allclose(np.asarray(got_t), np.asarray(ref_t), rtol=5e-2, atol=5e-2)

    # (3) 4^3 valid-conv heads (mu / log_var path)
    xh = jax.random.normal(ks[6], (2, 4, 4, 4, 8), jnp.float32)
    wm = jax.random.normal(ks[7], (5, 8, 4, 4, 4), jnp.float32) * 0.1
    wv = jax.random.normal(ks[8], (5, 8, 4, 4, 4), jnp.float32) * 0.1
    bm = jnp.zeros((5,), jnp.float32)
    bv = jnp.ones((5,), jnp.float32)
    mu, lv = jax.jit(lambda x: conv3d_k4s1p0_heads(
        x, [(wm, bm), (wv, bv)], out_dtype=jnp.float32))(xh)
    ref_mu = jnp.einsum("bdhwc,ocdhw->bo", xh, wm) + bm
    ref_lv = jnp.einsum("bdhwc,ocdhw->bo", xh, wv) + bv
    np.testing.assert_allclose(np.asarray(mu).reshape(2, 5), np.asarray(ref_mu),
                               rtol=5e-2, atol=5e-2)
    np.testing.assert_allclose(np.asarray(lv).reshape(2, 5), np.asarray(ref_lv),
                               rtol=5e-2, atol=5e-2)

    # (4) 1^3 -> 4^3 transposed conv (dec1 path)
    z = jax.random.normal(ks[9], (2, 1, 1, 1, 16), jnp.float32)
    wz = jax.random.normal(ks[0], (16, 32, 4, 4, 4), jnp.float32) * 0.1
    bz = jnp.zeros((32,), jnp.float32)
    got_z = jax.jit(lambda z: conv_transpose3d_k4s1p0_from_1(z, wz, bz, "none",
                                                             out_dtype=jnp.float32))(z)
    ref_z = jnp.einsum("bc,codhw->bdhwo", z.reshape(2, 16), wz) + bz
    np.testing.assert_allclose(np.asarray(got_z), np.asarray(ref_z),
                               rtol=5e-2, atol=5e-2)


if __name__ == "__main__":
    _self_check()

    # Smallest spatial size the architecture accepts end-to-end: the encoder halves
    # 5x (128 -> 4) before the valid 4^3 latent convs, and the decoder always rebuilds
    # 1 -> 4 -> 128. Batch kept at 1 to stay small.
    key = jax.random.PRNGKey(0)
    k_x, k_p, k_eps = jax.random.split(key, 3)
    x = jax.random.normal(k_x, (1, 1, 128, 128, 128), jnp.float32)      # NCDHW

    params = init_params(k_p, in_channels=1, latent_dim=64, out_channels=1)

    recon, mu, log_var = vae_generator_forward(params, x, k_eps)
    jax.block_until_ready((recon, mu, log_var))

    assert recon.shape == (1, 1, 128, 128, 128), recon.shape
    assert mu.shape == (1, 64, 1, 1, 1), mu.shape
    assert log_var.shape == (1, 64, 1, 1, 1), log_var.shape
    assert bool(jnp.all(jnp.isfinite(recon)))
    assert bool(jnp.all((recon >= 0.0) & (recon <= 1.0)))               # sigmoid output

    print("KERNEL_OK")
</pallas_src>

<mosaic_0001>
module attributes {stable_mosaic.version = 11 : i64} {
  func.func @_matmul_bias_act_kernel(%arg0: i32, %arg1: i32, %arg2: memref<64x224xbf16, #tpu.memory_space<vmem>>, %arg3: memref<224x16xbf16, #tpu.memory_space<vmem>>, %arg4: memref<1x16xf32, #tpu.memory_space<vmem>>, %arg5: memref<64x16xf32, #tpu.memory_space<vmem>>) attributes {dimension_semantics = [#tpu.dimension_semantics<parallel>, #tpu.dimension_semantics<parallel>], iteration_bounds = array<i64: 1, 1>, scalar_prefetch = 0 : i64, scratch_operands = 0 : i64, tpu.core_type = #tpu.core_type<tc>, window_params = [{transform_indices = @transform_0, window_bounds = array<i64: 64, 224>}, {transform_indices = @transform_1, window_bounds = array<i64: 224, 16>}, {transform_indices = @transform_2, window_bounds = array<i64: 1, 16>}, {transform_indices = @transform_3, window_bounds = array<i64: 64, 16>}]} {
    %c0 = arith.constant 0 : index
    %c0_0 = arith.constant 0 : index
    %0 = vector.load %arg2[%c0, %c0_0] : memref<64x224xbf16, #tpu.memory_space<vmem>>, vector<64x224xbf16>
    %c0_1 = arith.constant 0 : index
    %c0_2 = arith.constant 0 : index
    %1 = vector.load %arg3[%c0_1, %c0_2] : memref<224x16xbf16, #tpu.memory_space<vmem>>, vector<224x16xbf16>
    %cst = arith.constant dense<0.000000e+00> : vector<64x16xf32>
    %2 = tpu.matmul %0, %1, %cst {dimension_numbers = #tpu.dot_dimension_numbers<[1], [0], [0], [1], [0, 0, 1, 1], [], []>} : vector<64x224xbf16>, vector<224x16xbf16>, vector<64x16xf32> -> vector<64x16xf32>
    %c0_3 = arith.constant 0 : index
    %c0_4 = arith.constant 0 : index
    %3 = vector.load %arg4[%c0_3, %c0_4] : memref<1x16xf32, #tpu.memory_space<vmem>>, vector<1x16xf32>
    %4 = vector.broadcast %3 : vector<1x16xf32> to vector<64x16xf32>
    %5 = arith.addf %2, %4 : vector<64x16xf32>
    %c0_5 = arith.constant 0 : index
    %c0_6 = arith.constant 0 : index
    %6 = vector.load %arg5[%c0_5, %c0_6] : memref<64x16xf32, #tpu.memory_space<vmem>>, vector<64x16xf32>
    tpu.vector_store %arg5[%c0_5, %c0_6], %5 {strides = array<i32>} : memref<64x16xf32, #tpu.memory_space<vmem>>, vector<64x16xf32>,
    return
  }
  func.func @transform_0(%arg0: i32, %arg1: i32) -> (i32, i32) {
    %c0_i32 = arith.constant 0 : i32
    %c0_i32_0 = arith.constant 0 : i32
    return %arg0, %c0_i32 : i32, i32
  }
  func.func @transform_1(%arg0: i32, %arg1: i32) -> (i32, i32) {
    %c0_i32 = arith.constant 0 : i32
    %c0_i32_0 = arith.constant 0 : i32
    return %c0_i32, %arg1 : i32, i32
  }
  func.func @transform_2(%arg0: i32, %arg1: i32) -> (i32, i32) {
    %c0_i32 = arith.constant 0 : i32
    %c0_i32_0 = arith.constant 0 : i32
    return %c0_i32, %arg1 : i32, i32
  }
  func.func @transform_3(%arg0: i32, %arg1: i32) -> (i32, i32) {
    %c0_i32 = arith.constant 0 : i32
    return %arg0, %arg1 : i32, i32
  }
}

</mosaic_0001>

<llo_original>
// kernel: _lambda_.1
$region0: #{_lambda_.1}
  #allocation0 [shape = 'u32[]', space=smem, size = 0x4, offset = 0x4, fixed_abs, tag = 'smem constant byte address 0x4 - core index']
  #allocation1 [shape = 'u32[144,128]{1,0:T(1,128)}', space=vmem, size = 0x12000, scoped, tag = 'internal scratch']
  %s0 = inlined_call_operand.vmem [shape: bf16[64,224], index: 0, kind: input, shape index: {}]
  %s1 = inlined_call_operand.vmem [shape: bf16[224,16], index: 1, kind: input, shape index: {}]
  %s2 = inlined_call_operand.vmem [shape: f32[1,16], index: 2, kind: input, shape index: {}]
  %s3 = inlined_call_operand.hbm [shape: f32[64,16], index: 3, kind: output, shape index: {}]
  %s4 = sld [smem:[#allocation0]]
  $region22: #{_lambda_.1} parent=0
    _
  %s6 = ssub.s32 1, %s4
  %s7 = scalar_select 0, %s6, %s4
  $region1: #{_lambda_.1} parent=0
    #allocation2 [shape = 'u8[32768]{0}', space=vmem, size = 0x8000, scoped, tag = 'output window, operand 0, single buffered']
    #allocation3 [shape = 's32[1]{0}', space=sflag, size = 0x4, scoped, tag = 'scoped memory for _lambda_.1']
    %8 = vsyncpa [#allocation3], 0
    // Predicated region
    $region2: #{_lambda_.1} parent=1 // pred_check
      _
    $region3: #{_lambda_.1} parent=1 // pred_check_branch
      %10 = sbr.rel (0) target = $region5
    $region4: #{_lambda_.1} parent=1 // pred_region
      _
    $region5: #{_lambda_.1} parent=1 // pred_fallthru
      _
    // Predicated region
    $region6: #{_lambda_.1} parent=1 // pred_check
      _
    $region7: #{_lambda_.1} parent=1 // pred_check_branch
      %12 = sbr.rel (0) target = $region9
    $region8: #{_lambda_.1} parent=1 // pred_region
      _
    $region9: #{_lambda_.1} parent=1 // pred_fallthru
      _
    // Predicated region
    $region10: #{_lambda_.1} parent=1 // pred_check
      _
    $region11: #{_lambda_.1} parent=1 // pred_check_branch
      %14 = sbr.rel (0) target = $region13
    $region12: #{_lambda_.1} parent=1 // pred_region
      _
    $region13: #{_lambda_.1} parent=1 // pred_fallthru
      _
    %v16 = vld [vmem:[%s0] sm:$0xff]
    %v17 = vld [vmem:[%s0 + $0x8] sm:$0xff]
    %v18 = vld [vmem:[%s0 + $0x10] sm:$0xff]
    %v19 = vld [vmem:[%s0 + $0x18] sm:$0xff]
    %v20 = vld [vmem:[%s0 + $0x20] sm:$0xff]
    %v21 = vld [vmem:[%s0 + $0x28] sm:$0xff]
    %v22 = vld [vmem:[%s0 + $0x30] sm:$0xff]
    %v23 = vld [vmem:[%s0 + $0x38] sm:$0xff]
    %v24 = vld [vmem:[%s1] sm:$0xf]
    %v25 = vld [vmem:[%s1 + $0x4] sm:$0xf]
    %v26 = vld [vmem:[%s1 + $0x8] sm:$0xf]
    %v27 = vld [vmem:[%s1 + $0xc] sm:$0xf]
    %v28 = vld [vmem:[%s1 + $0x10] sm:$0xf]
    %v29 = vld [vmem:[%s1 + $0x14] sm:$0xf]
    %v30 = vld [vmem:[%s1 + $0x18] sm:$0xf]
    %v31 = vld [vmem:[%s1 + $0x1c] sm:$0xf]
    %v32 = vld [vmem:[%s1 + $0x20] sm:$0xf]
    %v33 = vld [vmem:[%s1 + $0x24] sm:$0xf]
    %v34 = vld [vmem:[%s1 + $0x28] sm:$0xf]
    %v35 = vld [vmem:[%s1 + $0x2c] sm:$0xf]
    %v36 = vld [vmem:[%s1 + $0x30] sm:$0xf]
    %v37 = vld [vmem:[%s1 + $0x34] sm:$0xf]
    %v38 = vld [vmem:[%s1 + $0x38] sm:$0xf]
    %v39 = vld [vmem:[%s1 + $0x3c] sm:$0xf]
    %v40 = vld [vmem:[%s1 + $0x40] sm:$0xf]
    %v41 = vld [vmem:[%s1 + $0x44] sm:$0xf]
    %v42 = vld [vmem:[%s1 + $0x48] sm:$0xf]
    %v43 = vld [vmem:[%s1 + $0x4c] sm:$0xf]
    %v44 = vld [vmem:[%s1 + $0x50] sm:$0xf]
    %v45 = vld [vmem:[%s1 + $0x54] sm:$0xf]
    %v46 = vld [vmem:[%s1 + $0x58] sm:$0xf]
    %v47 = vld [vmem:[%s1 + $0x5c] sm:$0xf]
    %v48 = vld [vmem:[%s1 + $0x60] sm:$0xf]
    %v49 = vld [vmem:[%s1 + $0x64] sm:$0xf]
    %v50 = vld [vmem:[%s1 + $0x68] sm:$0xf]
    %v51 = vld [vmem:[%s1 + $0x6c] sm:$0xf]
    %v52 = vld [vmem:[%s2] sm:$0x1]
    %v54 = vlaneseq
    %v55 = vshrl.u32 %v54, 7
    %v56 = vsub.s32 0, %v55
    %v57 = vrot.slane %v52, %v56
    %v67 = vunpack.c.l.b16 %v16
    %v68 = vunpack.c.h.b16 %v16
    %v69 = vunpack.c.l.b16 %v17
    %v70 = vunpack.c.h.b16 %v17
    %v71 = vunpack.c.l.b16 %v18
    %v72 = vunpack.c.h.b16 %v18
    %v73 = vunpack.c.l.b16 %v19
    %v74 = vunpack.c.h.b16 %v19
    %v75 = vunpack.c.l.b16 %v20
    %v76 = vunpack.c.h.b16 %v20
    %v77 = vunpack.c.l.b16 %v21
    %v78 = vunpack.c.h.b16 %v21
    %v79 = vunpack.c.l.b16 %v22
    %v80 = vunpack.c.h.b16 %v22
    %v81 = vunpack.c.l.b16 %v23
    %v82 = vunpack.c.h.b16 %v23
    %v83 = vpack.c.b16 %v69, %v67
    %v84 = vpack.c.b16 %v70, %v68
    %v85 = vpack.c.b16 %v73, %v71
    %v86 = vpack.c.b16 %v74, %v72
    %v87 = vpack.c.b16 %v77, %v75
    %v88 = vpack.c.b16 %v78, %v76
    %v89 = vpack.c.b16 %v81, %v79
    %v90 = vpack.c.b16 %v82, %v80
    %v123 = vunpack.c.l.b16 %v24
    %v124 = vunpack.c.l.b16 %v25
    %v125 = vunpack.c.l.b16 %v26
    %v126 = vunpack.c.l.b16 %v27
    %v127 = vunpack.c.l.b16 %v28
    %v128 = vunpack.c.l.b16 %v29
    %v129 = vunpack.c.l.b16 %v30
    %v130 = vunpack.c.l.b16 %v31
    %v131 = vunpack.c.l.b16 %v32
    %v132 = vunpack.c.l.b16 %v33
    %v133 = vunpack.c.l.b16 %v34
    %v134 = vunpack.c.l.b16 %v35
    %v135 = vunpack.c.l.b16 %v36
    %v136 = vunpack.c.l.b16 %v37
    %v137 = vunpack.c.l.b16 %v38
    %v138 = vunpack.c.l.b16 %v39
    %v139 = vunpack.c.l.b16 %v40
    %v140 = vunpack.c.l.b16 %v41
    %v141 = vunpack.c.l.b16 %v42
    %v142 = vunpack.c.l.b16 %v43
    %v143 = vunpack.c.l.b16 %v44
    %v144 = vunpack.c.l.b16 %v45
    %v145 = vunpack.c.l.b16 %v46
    %v146 = vunpack.c.l.b16 %v47
    %v147 = vunpack.c.l.b16 %v48
    %v148 = vunpack.c.l.b16 %v49
    %v149 = vunpack.c.l.b16 %v50
    %v150 = vunpack.c.l.b16 %v51
    %v151 = vpack.c.b16 %v124, %v123
    %v152 = vpack.c.b16 %v126, %v125
    %v153 = vpack.c.b16 %v128, %v127
    %v154 = vpack.c.b16 %v130, %v129
    %v155 = vpack.c.b16 %v132, %v131
    %v156 = vpack.c.b16 %v134, %v133
    %v157 = vpack.c.b16 %v136, %v135
    %v158 = vpack.c.b16 %v138, %v137
    %v159 = vpack.c.b16 %v140, %v139
    %v160 = vpack.c.b16 %v142, %v141
    %v161 = vpack.c.b16 %v144, %v143
    %v162 = vpack.c.b16 %v146, %v145
    %v163 = vpack.c.b16 %v148, %v147
    %v164 = vpack.c.b16 %v150, %v149
    %vm179 = vcmask 785408
    %v181 = vsel %vm179, %v84, 0
    %v184 = vsel %vm179, %v86, 0
    %v187 = vsel %vm179, %v88, 0
    %v190 = vsel %vm179, %v90, 0
    %192 = vmatprep.subr.bf16.mxu0 0
    %193 = vmatpush1.bf16.msra.mxu0 %v151
    %194 = vmatprep.subr.bf16.mxu0 0
    %195 = vmatpush1.bf16.msra.mxu0 %v152
    %196 = vmatprep.subr.bf16.mxu0 0
    %197 = vmatpush1.bf16.msra.mxu0 %v153
    %198 = vmatprep.subr.bf16.mxu0 0
    %199 = vmatpush1.bf16.msra.mxu0 %v154
    %200 = vmatprep.subr.bf16.mxu0 0
    %201 = vmatpush1.bf16.msra.mxu0 %v155
    %202 = vmatprep.subr.bf16.mxu0 0
    %203 = vmatpush1.bf16.msra.mxu0 %v156
    %204 = vmatprep.subr.bf16.mxu0 0
    %205 = vmatpush1.bf16.msra.mxu0 %v157
    %206 = vmatprep.subr.bf16.mxu0 0
    %207 = vmatpush1.bf16.msra.mxu0 %v158
    %208 = vmatprep.subr.bf16.mxu0 0
    %209 = vmatpush1.bf16.msra.mxu0 %v159
    %210 = vmatprep.subr.bf16.mxu0 0
    %211 = vmatpush1.bf16.msra.mxu0 %v160
    %212 = vmatprep.subr.bf16.mxu0 0
    %213 = vmatpush1.bf16.msra.mxu0 %v161
    %214 = vmatprep.subr.bf16.mxu0 0
    %215 = vmatpush1.bf16.msra.mxu0 %v162
    %216 = vmatprep.subr.bf16.mxu0 0
    %217 = vmatpush1.bf16.msra.mxu0 %v163
    %218 = vmatprep.subr.bf16.mxu0 0
    %219 = vmatpush1.bf16.msra.mxu0 %v164
    %220 = vmatprep.subr.bf16.mxu0 0
    %221 = vmatpush1.bf16.msra.mxu0 0
    %222 = vmatprep.subr.bf16.mxu0 0
    %223 = vmatpush1.bf16.msra.mxu0 0
    %224 = vmatprep.mubr.bf16.mxu0 %v181
    %225 = vmatmul.mubr.bf16.gmra.mrb[0].mxu0 %v83
    %v226 = vpop.f32.mrb[0].mxu0
    %v227 = vadd.f32 %v57, %v226
    %v228 = vpop.f32.mrb[0].mxu0
    %v229 = vpop.f32.mrb[0].mxu0
    %v230 = vadd.f32 %v57, %v229
    %v231 = vpop.f32.mrb[0].mxu0
    %232 = vmatprep.mubr.bf16.mxu0 %v184
    %233 = vmatmul.mubr.bf16.gmra.mrb[0].mxu0 %v85
    %v234 = vpop.f32.mrb[0].mxu0
    %v235 = vadd.f32 %v57, %v234
    %v236 = vpop.f32.mrb[0].mxu0
    %v237 = vpop.f32.mrb[0].mxu0
    %v238 = vadd.f32 %v57, %v237
    %v239 = vpop.f32.mrb[0].mxu0
    %240 = vmatprep.mubr.bf16.mxu0 %v187
    %241 = vmatmul.mubr.bf16.gmra.mrb[0].mxu0 %v87
    %v242 = vpop.f32.mrb[0].mxu0
    %v243 = vadd.f32 %v57, %v242
    %v244 = vpop.f32.mrb[0].mxu0
    %v245 = vpop.f32.mrb[0].mxu0
    %v246 = vadd.f32 %v57, %v245
    %v247 = vpop.f32.mrb[0].mxu0
    %248 = vmatprep.mubr.bf16.mxu0 %v190
    %249 = vmatmul.mubr.bf16.gmra.mrb[0].mxu0 %v89
    %v250 = vpop.f32.mrb[0].mxu0
    %v251 = vadd.f32 %v57, %v250
    %v252 = vpop.f32.mrb[0].mxu0
    %v253 = vpop.f32.mrb[0].mxu0
    %v254 = vadd.f32 %v57, %v253
    %v255 = vpop.f32.mrb[0].mxu0
    %256 = vdwg.mxu0
    %vm257 = vcmask 130048
    %258 = vst.msk [vmem:[#allocation2] sm:$0xff] %vm257, %v227
    %259 = vst.msk [vmem:[#allocation2 + $0x8] sm:$0xff] %vm257, %v230
    %260 = vst.msk [vmem:[#allocation2 + $0x10] sm:$0xff] %vm257, %v235
    %261 = vst.msk [vmem:[#allocation2 + $0x18] sm:$0xff] %vm257, %v238
    %262 = vst.msk [vmem:[#allocation2 + $0x20] sm:$0xff] %vm257, %v243
    %263 = vst.msk [vmem:[#allocation2 + $0x28] sm:$0xff] %vm257, %v246
    %264 = vst.msk [vmem:[#allocation2 + $0x30] sm:$0xff] %vm257, %v251
    %265 = vst.msk [vmem:[#allocation2 + $0x38] sm:$0xff] %vm257, %v254
    // Predicated region
    $region14: #{_lambda_.1} parent=1 // pred_check
      _
    $region15: #{_lambda_.1} parent=1 // pred_check_branch
      %267 = sbr.rel (0) target = $region17
    $region16: #{_lambda_.1} parent=1 // pred_region
      %s269 = ssub.s32 1024, 1024
      %270 = vsyncadd [#allocation3], %s269
      %s271 = sshll.u32 [#allocation2], 4
      %s272 = int_to_ptr.vmem [resolvable:$true] %s271
      %277 = dma.vmem_to_hbm [thread:$0]  %s272, 1024, %s3, [#allocation3], 128, 128, 8
    $region17: #{_lambda_.1} parent=1 // pred_fallthru
      _
    // Predicated region
    $region18: #{_lambda_.1} parent=1 // pred_check
      _
    $region19: #{_lambda_.1} parent=1 // pred_check_branch
      %279 = sbr.rel (0) target = $region21
    $region20: #{_lambda_.1} parent=1 // pred_region
      %280 = dma.done [#allocation3], 1024
    $region21: #{_lambda_.1} parent=1 // pred_fallthru
      _
    %281 = vsyncpa [#allocation3], 1

</llo_original>
